<compile_context>
chip_gen: v6e
topology: v6e:2x2x1
jax: 0.10.0
libtpu: 0.0.40
codegen_flags: <defaults>
</compile_context>

<pallas_src>
import functools
import math

import jax
import jax.numpy as jnp
from jax.experimental import pallas as pl
from jax.experimental.pallas import tpu as pltpu


_VMEM_BUDGET_BYTES = 40 * 1024 * 1024   # working-set target (headroom under v7x 64 MiB)
_VMEM_LIMIT_BYTES = 48 * 1024 * 1024    # scoped VMEM limit passed to the compiler


def _round_up(x, m):
    return ((x + m - 1) // m) * m


def _pick_tiles(M, H, I, itemsize, budget=_VMEM_BUDGET_BYTES):
    """Pick (tile_m, tile_i) fitting the VMEM budget and TPU tiling rules."""
    # Row tile: multiple of the 8-row sublane tile; bigger for narrower dtypes.
    tm = min(_round_up(max(M, 1), 8), 512 if itemsize <= 2 else 256)

    # Intermediate tile: multiple of 128 lanes that divides I (so every k block
    # is full); fall back to the whole of I for tiny / unaligned configs.
    if I % 128 == 0:
        i_cands = [c for c in (1024, 512, 256, 128) if c <= I and I % c == 0] or [128]
    else:
        i_cands = [I]

    def working_set(tm_, ti_):
        # double-buffered x / W_fc / W_proj / out blocks + resident f32 accumulator
        return 2 * (2 * tm_ * H + H * ti_ + ti_ * H) * itemsize + tm_ * H * 4

    ti = i_cands[-1]
    for c in i_cands:                    # descending -> largest tile that fits
        if working_set(tm, c) <= budget:
            ti = c
            break
    while working_set(tm, ti) > budget and tm > 8:
        tm = max(8, ((tm // 2) + 7) // 8 * 8)
    return tm, ti


def _mlp_kernel(neg_slope, x_ref, w_fc_ref, w_proj_ref, o_ref, acc_ref):
    # x_ref: (tile_m, H), w_fc_ref: (H, tile_i), w_proj_ref: (tile_i, H)
    # o_ref: (tile_m, H), acc_ref: (tile_m, H) f32, resident across the k axis.
    k = pl.program_id(1)

    @pl.when(k == 0)
    def _init():
        acc_ref[...] = jnp.zeros_like(acc_ref)

    h = jnp.dot(x_ref[...], w_fc_ref[...], preferred_element_type=jnp.float32)
    # LeakyReLU: torch.where(h >= 0, h, h * neg_slope).  For neg_slope <= 1 this
    # is exactly max(h, h * neg_slope) -> a single vmax on the VALU.
    if neg_slope == 0.0:
        h = jnp.maximum(h, 0.0)
    elif neg_slope <= 1.0:
        h = jnp.maximum(h, h * neg_slope)
    else:
        h = jnp.where(h >= 0.0, h, h * neg_slope)

    acc_ref[...] += jnp.dot(h.astype(w_proj_ref.dtype), w_proj_ref[...],
                            preferred_element_type=jnp.float32)

    @pl.when(k == pl.num_programs(1) - 1)
    def _store():
        o_ref[...] = acc_ref[...].astype(o_ref.dtype)


def simplified_mlp(hidden_states, w_fc, w_proj, neg_slope=0.0,
                   tile_m=None, tile_i=None, compute_dtype=None):
    """hidden_states: (B, S, H); w_fc: (H, I); w_proj: (I, H).

    compute_dtype: optionally cast operands (e.g. jnp.bfloat16) for the MXU;
    accumulation stays f32 and the output keeps the input dtype.
    """
    B, S, H = hidden_states.shape
    Hw, I = w_fc.shape
    assert Hw == H and w_proj.shape == (I, H)

    out_dtype = hidden_states.dtype
    if compute_dtype is not None:
        hidden_states = hidden_states.astype(compute_dtype)
        w_fc = w_fc.astype(compute_dtype)
        w_proj = w_proj.astype(compute_dtype)

    M = B * S
    x2d = hidden_states.reshape(M, H)
    itemsize = jnp.dtype(x2d.dtype).itemsize

    auto_tm, auto_ti = _pick_tiles(M, H, I, itemsize)
    if tile_m is None:
        tile_m = auto_tm
    if tile_i is None:
        tile_i = auto_ti
    assert I % tile_i == 0, "tile_i must divide the intermediate size"

    # Pad ragged M with zero rows (zeros flow to zeros; sliced off afterwards).
    M_pad = _round_up(M, tile_m)
    if M_pad != M:
        x2d = jnp.pad(x2d, ((0, M_pad - M), (0, 0)))

    n_m = M_pad // tile_m
    n_k = I // tile_i

    cost = pl.CostEstimate(
        flops=4 * M_pad * I * H,                              # two matmuls
        transcendentals=0,
        bytes_accessed=(2 * M_pad * H + 2 * H * I) * itemsize,
    )

    kernel = functools.partial(_mlp_kernel, float(neg_slope))

    out2d = pl.pallas_call(
        kernel,
        out_shape=jax.ShapeDtypeStruct((M_pad, H), out_dtype),
        grid_spec=pltpu.PrefetchScalarGridSpec(
            num_scalar_prefetch=0,
            grid=(n_m, n_k),                                  # reduction axis last
            in_specs=[
                pl.BlockSpec((tile_m, H), lambda i, k: (i, 0)),   # x rows tile
                pl.BlockSpec((H, tile_i), lambda i, k: (0, k)),   # W_fc k-slab
                pl.BlockSpec((tile_i, H), lambda i, k: (k, 0)),   # W_proj k-slab
            ],
            out_specs=pl.BlockSpec((tile_m, H), lambda i, k: (i, 0)),
            scratch_shapes=[pltpu.VMEM((tile_m, H), jnp.float32)],
        ),
        compiler_params=pltpu.CompilerParams(
            dimension_semantics=("parallel", "arbitrary"),
            vmem_limit_bytes=_VMEM_LIMIT_BYTES,
        ),
        cost_estimate=cost,
    )(x2d, w_fc, w_proj)

    if M_pad != M:
        out2d = out2d[:M]
    return out2d.reshape(B, S, H)


def reference_mlp(hidden_states, w_fc, w_proj, neg_slope=0.0):
    h = jnp.einsum("bsh,hi->bsi", hidden_states, w_fc)
    h = jnp.where(h >= 0.0, h, h * neg_slope)
    return jnp.einsum("bsi,ih->bsh", h, w_proj)


if __name__ == "__main__":
    # Small shapes consistent with the module: hidden=32, ff_mult=4 -> intermediate=128.
    # NOTE: at H=32 the output lane width is < 128, so stores are masked and the
    # MXU is underutilized; the kernel structure pays off at production H/I.
    B, S, H = 2, 8, 32
    ff_mult = 4
    I = H * ff_mult
    neg_slope = 0.0  # lrelu_neg_slope default

    key = jax.random.PRNGKey(0)
    kx, kfc, kproj = jax.random.split(key, 3)

    x = jax.random.normal(kx, (B, S, H), dtype=jnp.float32)
    # SimplifiedConv1D init_type='normal': weight ~ N(0, 0.02^2), shape (nx, nf)
    w_fc = 0.02 * jax.random.normal(kfc, (H, I), dtype=jnp.float32)
    w_proj = 0.02 * jax.random.normal(kproj, (I, H), dtype=jnp.float32)

    out = simplified_mlp(x, w_fc, w_proj, neg_slope=neg_slope)
    out = jax.block_until_ready(out)

    ref = reference_mlp(x, w_fc, w_proj, neg_slope=neg_slope)
    assert out.shape == (B, S, H)
    assert jnp.allclose(out, ref, atol=1e-5, rtol=1e-5), "mismatch vs reference"

    # TODO(synk): dropout (resid_pdrop=0.1) omitted — identity at inference/eval.
    print("KERNEL_OK")
</pallas_src>

<mosaic_0001>
module attributes {stable_mosaic.version = 11 : i64} {
  func.func @_mlp_kernel(%arg0: i32, %arg1: i32, %arg2: memref<16x32xf32, #tpu.memory_space<vmem>>, %arg3: memref<32x128xf32, #tpu.memory_space<vmem>>, %arg4: memref<128x32xf32, #tpu.memory_space<vmem>>, %arg5: memref<16x32xf32, #tpu.memory_space<vmem>>, %arg6: memref<16x32xf32, #tpu.memory_space<vmem>>) attributes {dimension_semantics = [#tpu.dimension_semantics<parallel>, #tpu.dimension_semantics<arbitrary>], iteration_bounds = array<i64: 1, 1>, scalar_prefetch = 0 : i64, scratch_operands = 1 : i64, tpu.core_type = #tpu.core_type<tc>, window_params = [{transform_indices = @transform_0, window_bounds = array<i64: 16, 32>}, {transform_indices = @transform_1, window_bounds = array<i64: 32, 128>}, {transform_indices = @transform_2, window_bounds = array<i64: 128, 32>}, {transform_indices = @transform_3, window_bounds = array<i64: 16, 32>}]} {
    %c0_i32 = arith.constant 0 : i32
    %0 = arith.cmpi eq, %arg1, %c0_i32 : i32
    %1 = arith.extui %0 : i1 to i32
    %c0_i32_0 = arith.constant 0 : i32
    %2 = arith.cmpi ne, %1, %c0_i32_0 : i32
    scf.if %2 {
      %cst_14 = arith.constant 0.000000e+00 : f32
      %16 = vector.broadcast %cst_14 : f32 to vector<16x32xf32>
      %c0_15 = arith.constant 0 : index
      %c0_16 = arith.constant 0 : index
      %17 = vector.load %arg6[%c0_15, %c0_16] : memref<16x32xf32, #tpu.memory_space<vmem>>, vector<16x32xf32>
      tpu.vector_store %arg6[%c0_15, %c0_16], %16 {strides = array<i32>} : memref<16x32xf32, #tpu.memory_space<vmem>>, vector<16x32xf32>,
    } else {
    }
    %c0 = arith.constant 0 : index
    %c0_1 = arith.constant 0 : index
    %3 = vector.load %arg2[%c0, %c0_1] : memref<16x32xf32, #tpu.memory_space<vmem>>, vector<16x32xf32>
    %c0_2 = arith.constant 0 : index
    %c0_3 = arith.constant 0 : index
    %4 = vector.load %arg3[%c0_2, %c0_3] : memref<32x128xf32, #tpu.memory_space<vmem>>, vector<32x128xf32>
    %cst = arith.constant dense<0.000000e+00> : vector<16x128xf32>
    %5 = tpu.matmul %3, %4, %cst {dimension_numbers = #tpu.dot_dimension_numbers<[1], [0], [0], [1], [0, 0, 1, 1], [], []>} : vector<16x32xf32>, vector<32x128xf32>, vector<16x128xf32> -> vector<16x128xf32>
    %cst_4 = arith.constant 0.000000e+00 : f32
    %6 = vector.broadcast %cst_4 : f32 to vector<16x128xf32>
    %7 = arith.maximumf %5, %6 : vector<16x128xf32>
    %c0_5 = arith.constant 0 : index
    %c0_6 = arith.constant 0 : index
    %8 = vector.load %arg6[%c0_5, %c0_6] : memref<16x32xf32, #tpu.memory_space<vmem>>, vector<16x32xf32>
    %c0_7 = arith.constant 0 : index
    %c0_8 = arith.constant 0 : index
    %9 = vector.load %arg4[%c0_7, %c0_8] : memref<128x32xf32, #tpu.memory_space<vmem>>, vector<128x32xf32>
    %cst_9 = arith.constant dense<0.000000e+00> : vector<16x32xf32>
    %10 = tpu.matmul %7, %9, %cst_9 {dimension_numbers = #tpu.dot_dimension_numbers<[1], [0], [0], [1], [0, 0, 1, 1], [], []>} : vector<16x128xf32>, vector<128x32xf32>, vector<16x32xf32> -> vector<16x32xf32>
    %11 = arith.addf %8, %10 : vector<16x32xf32>
    %c0_10 = arith.constant 0 : index
    %c0_11 = arith.constant 0 : index
    %12 = vector.load %arg6[%c0_10, %c0_11] : memref<16x32xf32, #tpu.memory_space<vmem>>, vector<16x32xf32>
    tpu.vector_store %arg6[%c0_10, %c0_11], %11 {strides = array<i32>} : memref<16x32xf32, #tpu.memory_space<vmem>>, vector<16x32xf32>,
    %c0_i32_12 = arith.constant 0 : i32
    %13 = arith.cmpi eq, %arg1, %c0_i32_12 : i32
    %14 = arith.extui %13 : i1 to i32
    %c0_i32_13 = arith.constant 0 : i32
    %15 = arith.cmpi ne, %14, %c0_i32_13 : i32
    scf.if %15 {
      %c0_14 = arith.constant 0 : index
      %c0_15 = arith.constant 0 : index
      %16 = vector.load %arg6[%c0_14, %c0_15] : memref<16x32xf32, #tpu.memory_space<vmem>>, vector<16x32xf32>
      %c0_16 = arith.constant 0 : index
      %c0_17 = arith.constant 0 : index
      %17 = vector.load %arg5[%c0_16, %c0_17] : memref<16x32xf32, #tpu.memory_space<vmem>>, vector<16x32xf32>
      tpu.vector_store %arg5[%c0_16, %c0_17], %16 {strides = array<i32>} : memref<16x32xf32, #tpu.memory_space<vmem>>, vector<16x32xf32>,
    } else {
    }
    return
  }
  func.func @transform_0(%arg0: i32, %arg1: i32) -> (i32, i32) {
    %c0_i32 = arith.constant 0 : i32
    %c0_i32_0 = arith.constant 0 : i32
    return %arg0, %c0_i32 : i32, i32
  }
  func.func @transform_1(%arg0: i32, %arg1: i32) -> (i32, i32) {
    %c0_i32 = arith.constant 0 : i32
    %c0_i32_0 = arith.constant 0 : i32
    return %c0_i32, %arg1 : i32, i32
  }
  func.func @transform_2(%arg0: i32, %arg1: i32) -> (i32, i32) {
    %c0_i32 = arith.constant 0 : i32
    %c0_i32_0 = arith.constant 0 : i32
    return %arg1, %c0_i32 : i32, i32
  }
  func.func @transform_3(%arg0: i32, %arg1: i32) -> (i32, i32) {
    %c0_i32 = arith.constant 0 : i32
    %c0_i32_0 = arith.constant 0 : i32
    return %arg0, %c0_i32 : i32, i32
  }
}

</mosaic_0001>

<llo_original>
// kernel: tpu_custom_call.1
$region0: #{tpu_custom_call.1}
  #allocation0 [shape = 'u32[]', space=smem, size = 0x4, offset = 0x4, fixed_abs, tag = 'smem constant byte address 0x4 - core index']
  #allocation1 [shape = 'u32[144,128]{1,0:T(1,128)}', space=vmem, size = 0x12000, scoped, tag = 'internal scratch']
  #allocation2 [shape = 'f32[16,32]{1,0:T(8,128)}', space=vmem, size = 0x2000, scoped, tag = 'scratch operand']
  %s0 = inlined_call_operand.vmem [shape: f32[16,32], index: 0, kind: input, shape index: {}]
  %s1 = inlined_call_operand.vmem [shape: f32[32,128], index: 1, kind: input, shape index: {}]
  %s2 = inlined_call_operand.vmem [shape: f32[128,32], index: 2, kind: input, shape index: {}]
  %s3 = inlined_call_operand.hbm [shape: f32[16,32], index: 3, kind: output, shape index: {}]
  %s4 = sld [smem:[#allocation0]]
  $region30: #{tpu_custom_call.1} parent=0
    _
  %s6 = ssub.s32 1, %s4
  %s7 = scalar_select 0, %s6, %s4
  $region1: #{tpu_custom_call.1} parent=0
    #allocation3 [shape = 'u8[8192]{0}', space=vmem, size = 0x2000, scoped, tag = 'output window, operand 0, single buffered']
    #allocation4 [shape = 's32[1]{0}', space=sflag, size = 0x4, scoped, tag = 'scoped memory for tpu_custom_call.1']
    %8 = vsyncpa [#allocation4], 0
    // Predicated region
    $region2: #{tpu_custom_call.1} parent=1 // pred_check
      _
    $region3: #{tpu_custom_call.1} parent=1 // pred_check_branch
      %10 = sbr.rel (0) target = $region5
    $region4: #{tpu_custom_call.1} parent=1 // pred_region
      _
    $region5: #{tpu_custom_call.1} parent=1 // pred_fallthru
      _
    // Predicated region
    $region6: #{tpu_custom_call.1} parent=1 // pred_check
      _
    $region7: #{tpu_custom_call.1} parent=1 // pred_check_branch
      %12 = sbr.rel (0) target = $region9
    $region8: #{tpu_custom_call.1} parent=1 // pred_region
      _
    $region9: #{tpu_custom_call.1} parent=1 // pred_fallthru
      _
    // Predicated region
    $region10: #{tpu_custom_call.1} parent=1 // pred_check
      _
    $region11: #{tpu_custom_call.1} parent=1 // pred_check_branch
      %14 = sbr.rel (0) target = $region13
    $region12: #{tpu_custom_call.1} parent=1 // pred_region
      _
    $region13: #{tpu_custom_call.1} parent=1 // pred_fallthru
      _
    %p15 = scmp.eq.s32.totalorder 0, 0
    // Predicated region
    $region14: #{tpu_custom_call.1} parent=1 // pred_check
      %p16 = pneg %p15
    $region15: #{tpu_custom_call.1} parent=1 // pred_check_branch
      %18 = sbr.rel (%p16) target = $region17
    $region16: #{tpu_custom_call.1} parent=1 // pred_region
      %vm19 = vcmask 261120
      %20 = vst.msk [vmem:[#allocation2] sm:$0xff] %vm19, 0.0
      %21 = vst.msk [vmem:[#allocation2 + $0x8] sm:$0xff] %vm19, 0.0
    $region17: #{tpu_custom_call.1} parent=1 // pred_fallthru
      _
    %v22 = vld [vmem:[%s0] sm:$0xff]
    %v23 = vld [vmem:[%s0 + $0x8] sm:$0xff]
    %v24 = vld [vmem:[%s1] sm:$0xff]
    %v25 = vld [vmem:[%s1 + $0x8] sm:$0xff]
    %v26 = vld [vmem:[%s1 + $0x10] sm:$0xff]
    %v27 = vld [vmem:[%s1 + $0x18] sm:$0xff]
    %vm28 = vcmask 261120
    %v30 = vsel %vm28, %v22, 0
    %v33 = vsel %vm28, %v23, 0
    %35 = vmatprep.subr.mxu0 0.0
    %36 = vmatpush1.msra.mxu0 0.0
    %37 = vmatprep.subr.mxu0 0.0
    %38 = vmatpush1.msra.mxu0 0.0
    %39 = vmatprep.subr.mxu0 0.0
    %40 = vmatpush1.msra.mxu0 0.0
    %41 = vmatprep.subr.mxu0 0.0
    %42 = vmatpush1.msra.mxu0 0.0
    %43 = vmatprep.subr.mxu0 0.0
    %44 = vmatpush1.msra.mxu0 0.0
    %45 = vmatprep.subr.mxu0 0.0
    %46 = vmatpush1.msra.mxu0 0.0
    %47 = vmatprep.subr.mxu0 0.0
    %48 = vmatpush1.msra.mxu0 0.0
    %49 = vmatprep.subr.mxu0 0.0
    %50 = vmatpush1.msra.mxu0 0.0
    %51 = vmatprep.subr.mxu0 0.0
    %52 = vmatpush1.msra.mxu0 0.0
    %53 = vmatprep.subr.mxu0 0.0
    %54 = vmatpush1.msra.mxu0 0.0
    %55 = vmatprep.subr.mxu0 0.0
    %56 = vmatpush1.msra.mxu0 0.0
    %57 = vmatprep.subr.mxu0 0.0
    %58 = vmatpush1.msra.mxu0 0.0
    %59 = vmatprep.subr.mxu0 0.0
    %60 = vmatpush1.msra.mxu0 %v27
    %61 = vmatprep.subr.mxu0 0.0
    %62 = vmatpush1.msra.mxu0 %v26
    %63 = vmatprep.subr.mxu0 0.0
    %64 = vmatpush1.msra.mxu0 %v25
    %65 = vmatprep.subr.mxu0 0.0
    %66 = vmatpush1.msra.mxu0 %v24
    %67 = vmatprep.subr.mxu0 0.0
    %68 = vmatpush2.msra.mxu0 0.0
    %69 = vmatprep.subr.mxu0 0.0
    %70 = vmatpush2.msra.mxu0 0.0
    %71 = vmatprep.subr.mxu0 0.0
    %72 = vmatpush2.msra.mxu0 0.0
    %73 = vmatprep.subr.mxu0 0.0
    %74 = vmatpush2.msra.mxu0 0.0
    %75 = vmatprep.subr.mxu0 0.0
    %76 = vmatpush2.msra.mxu0 0.0
    %77 = vmatprep.subr.mxu0 0.0
    %78 = vmatpush2.msra.mxu0 0.0
    %79 = vmatprep.subr.mxu0 0.0
    %80 = vmatpush2.msra.mxu0 0.0
    %81 = vmatprep.subr.mxu0 0.0
    %82 = vmatpush2.msra.mxu0 0.0
    %83 = vmatprep.subr.mxu0 0.0
    %84 = vmatpush2.msra.mxu0 0.0
    %85 = vmatprep.subr.mxu0 0.0
    %86 = vmatpush2.msra.mxu0 0.0
    %87 = vmatprep.subr.mxu0 0.0
    %88 = vmatpush2.msra.mxu0 0.0
    %89 = vmatprep.subr.mxu0 0.0
    %90 = vmatpush2.msra.mxu0 0.0
    %91 = vmatprep.subr.mxu0 0.0
    %92 = vmatpush2.msra.mxu0 0.0
    %93 = vmatprep.subr.mxu0 0.0
    %94 = vmatpush2.msra.mxu0 0.0
    %95 = vmatprep.subr.mxu0 0.0
    %96 = vmatpush2.msra.mxu0 0.0
    %97 = vmatprep.subr.mxu0 0.0
    %98 = vmatpush2.msra.mxu0 0.0
    %99 = vmatprep.mubr.f32.mxu0 0.0
    %100 = vmatmul.mubr.f32.gmra.mxu0 %v30
    %v101 = vpop.f32.mrf.mxu0
    %v102 = vadd.f32 0.0, %v101
    %v103 = vpop.f32.mrf.mxu0
    %104 = vmatprep.mubr.f32.mxu0 0.0
    %105 = vmatmul.mubr.f32.gmra.mxu0 %v33
    %v106 = vpop.f32.mrf.mxu0
    %v107 = vadd.f32 0.0, %v106
    %v108 = vpop.f32.mrf.mxu0
    %109 = vdwg.mxu0
    %v110 = vmax.f32 %v102, 0.0
    %v111 = vmax.f32 %v107, 0.0
    %v112 = vld [vmem:[#allocation2] sm:$0xff]
    %v113 = vld [vmem:[#allocation2 + $0x8] sm:$0xff]
    %v114 = vld [vmem:[%s2] sm:$0xff]
    %v115 = vld [vmem:[%s2 + $0x8] sm:$0xff]
    %v116 = vld [vmem:[%s2 + $0x10] sm:$0xff]
    %v117 = vld [vmem:[%s2 + $0x18] sm:$0xff]
    %v118 = vld [vmem:[%s2 + $0x20] sm:$0xff]
    %v119 = vld [vmem:[%s2 + $0x28] sm:$0xff]
    %v120 = vld [vmem:[%s2 + $0x30] sm:$0xff]
    %v121 = vld [vmem:[%s2 + $0x38] sm:$0xff]
    %v122 = vld [vmem:[%s2 + $0x40] sm:$0xff]
    %v123 = vld [vmem:[%s2 + $0x48] sm:$0xff]
    %v124 = vld [vmem:[%s2 + $0x50] sm:$0xff]
    %v125 = vld [vmem:[%s2 + $0x58] sm:$0xff]
    %v126 = vld [vmem:[%s2 + $0x60] sm:$0xff]
    %v127 = vld [vmem:[%s2 + $0x68] sm:$0xff]
    %v128 = vld [vmem:[%s2 + $0x70] sm:$0xff]
    %v129 = vld [vmem:[%s2 + $0x78] sm:$0xff]
    %130 = vmatprep.subr.mxu0 0.0
    %131 = vmatpush1.msra.mxu0 %v129
    %132 = vmatprep.subr.mxu0 0.0
    %133 = vmatpush1.msra.mxu0 %v128
    %134 = vmatprep.subr.mxu0 0.0
    %135 = vmatpush1.msra.mxu0 %v127
    %136 = vmatprep.subr.mxu0 0.0
    %137 = vmatpush1.msra.mxu0 %v126
    %138 = vmatprep.subr.mxu0 0.0
    %139 = vmatpush1.msra.mxu0 %v125
    %140 = vmatprep.subr.mxu0 0.0
    %141 = vmatpush1.msra.mxu0 %v124
    %142 = vmatprep.subr.mxu0 0.0
    %143 = vmatpush1.msra.mxu0 %v123
    %144 = vmatprep.subr.mxu0 0.0
    %145 = vmatpush1.msra.mxu0 %v122
    %146 = vmatprep.subr.mxu0 0.0
    %147 = vmatpush1.msra.mxu0 %v121
    %148 = vmatprep.subr.mxu0 0.0
    %149 = vmatpush1.msra.mxu0 %v120
    %150 = vmatprep.subr.mxu0 0.0
    %151 = vmatpush1.msra.mxu0 %v119
    %152 = vmatprep.subr.mxu0 0.0
    %153 = vmatpush1.msra.mxu0 %v118
    %154 = vmatprep.subr.mxu0 0.0
    %155 = vmatpush1.msra.mxu0 %v117
    %156 = vmatprep.subr.mxu0 0.0
    %157 = vmatpush1.msra.mxu0 %v116
    %158 = vmatprep.subr.mxu0 0.0
    %159 = vmatpush1.msra.mxu0 %v115
    %160 = vmatprep.subr.mxu0 0.0
    %161 = vmatpush1.msra.mxu0 %v114
    %162 = vmatprep.subr.mxu0 0.0
    %163 = vmatpush2.msra.mxu0 0.0
    %164 = vmatprep.subr.mxu0 0.0
    %165 = vmatpush2.msra.mxu0 0.0
    %166 = vmatprep.subr.mxu0 0.0
    %167 = vmatpush2.msra.mxu0 0.0
    %168 = vmatprep.subr.mxu0 0.0
    %169 = vmatpush2.msra.mxu0 0.0
    %170 = vmatprep.subr.mxu0 0.0
    %171 = vmatpush2.msra.mxu0 0.0
    %172 = vmatprep.subr.mxu0 0.0
    %173 = vmatpush2.msra.mxu0 0.0
    %174 = vmatprep.subr.mxu0 0.0
    %175 = vmatpush2.msra.mxu0 0.0
    %176 = vmatprep.subr.mxu0 0.0
    %177 = vmatpush2.msra.mxu0 0.0
    %178 = vmatprep.subr.mxu0 0.0
    %179 = vmatpush2.msra.mxu0 0.0
    %180 = vmatprep.subr.mxu0 0.0
    %181 = vmatpush2.msra.mxu0 0.0
    %182 = vmatprep.subr.mxu0 0.0
    %183 = vmatpush2.msra.mxu0 0.0
    %184 = vmatprep.subr.mxu0 0.0
    %185 = vmatpush2.msra.mxu0 0.0
    %186 = vmatprep.subr.mxu0 0.0
    %187 = vmatpush2.msra.mxu0 0.0
    %188 = vmatprep.subr.mxu0 0.0
    %189 = vmatpush2.msra.mxu0 0.0
    %190 = vmatprep.subr.mxu0 0.0
    %191 = vmatpush2.msra.mxu0 0.0
    %192 = vmatprep.subr.mxu0 0.0
    %193 = vmatpush2.msra.mxu0 0.0
    %194 = vmatprep.mubr.f32.mxu0 0.0
    %195 = vmatmul.mubr.f32.gmra.mxu0 %v110
    %v196 = vpop.f32.mrf.mxu0
    %v197 = vadd.f32 0.0, %v196
    %v198 = vpop.f32.mrf.mxu0
    %199 = vmatprep.mubr.f32.mxu0 0.0
    %200 = vmatmul.mubr.f32.gmra.mxu0 %v111
    %v201 = vpop.f32.mrf.mxu0
    %v202 = vadd.f32 0.0, %v201
    %v203 = vpop.f32.mrf.mxu0
    %204 = vdwg.mxu0
    %v205 = vadd.f32 %v112, %v197
    %v206 = vadd.f32 %v113, %v202
    %207 = vst.msk [vmem:[#allocation2] sm:$0xff] %vm28, %v205
    %208 = vst.msk [vmem:[#allocation2 + $0x8] sm:$0xff] %vm28, %v206
    // Predicated region
    $region18: #{tpu_custom_call.1} parent=1 // pred_check
      %p209 = pneg %p15
    $region19: #{tpu_custom_call.1} parent=1 // pred_check_branch
      %211 = sbr.rel (%p209) target = $region21
    $region20: #{tpu_custom_call.1} parent=1 // pred_region
      %v212 = vld [vmem:[#allocation2] sm:$0xff]
      %v213 = vld [vmem:[#allocation2 + $0x8] sm:$0xff]
      %214 = vst.msk [vmem:[#allocation3] sm:$0xff] %vm28, %v212
      %215 = vst.msk [vmem:[#allocation3 + $0x8] sm:$0xff] %vm28, %v213
    $region21: #{tpu_custom_call.1} parent=1 // pred_fallthru
      _
    // Predicated region
    $region22: #{tpu_custom_call.1} parent=1 // pred_check
      _
    $region23: #{tpu_custom_call.1} parent=1 // pred_check_branch
      %217 = sbr.rel (0) target = $region25
    $region24: #{tpu_custom_call.1} parent=1 // pred_region
      %s219 = ssub.s32 256, 256
      %220 = vsyncadd [#allocation4], %s219
      %s221 = sshll.u32 [#allocation3], 4
      %s222 = int_to_ptr.vmem [resolvable:$true] %s221
      %227 = dma.vmem_to_hbm [thread:$0]  %s222, 256, %s3, [#allocation4], 128, 128, 8
    $region25: #{tpu_custom_call.1} parent=1 // pred_fallthru
      _
    // Predicated region
    $region26: #{tpu_custom_call.1} parent=1 // pred_check
      _
    $region27: #{tpu_custom_call.1} parent=1 // pred_check_branch
      %229 = sbr.rel (0) target = $region29
    $region28: #{tpu_custom_call.1} parent=1 // pred_region
      %230 = dma.done [#allocation4], 256
    $region29: #{tpu_custom_call.1} parent=1 // pred_fallthru
      _
    %231 = vsyncpa [#allocation4], 1

</llo_original>
